<compile_context>
chip_gen: v5e
topology: v5e:2x2
jax: 0.10.0
libtpu: 0.0.40
codegen_flags: <defaults>
</compile_context>

<pallas_src>
import jax
import jax.numpy as jnp
from jax.experimental import pallas as pl
from jax.experimental.pallas import tpu as pltpu

NUM_BRANCH = 4          # ReLU, LeakyReLU(0.2), PReLU, Identity
LEAKY_SLOPE = 0.2

# Tile caps: 256 x 2048 f32 = 2 MiB per tile -> double-buffered in+out fits everywhere.
TILE_R_MAX = 256        # multiple of 8  (sublane)
TILE_HW_MAX = 2048      # multiple of 128 (lane)


def mixed_act_kernel(x_ref, pos_ref, neg_ref, o_ref):
    """One grid step = one (row-tile, HW-tile) block.

    x_ref   : VMEM (TILE_R, TILE_HW)  activations
    pos_ref : VMEM (TILE_R, 1)        per-(sample,channel) scale for x >= 0
    neg_ref : VMEM (TILE_R, 1)        per-(sample,channel) scale for x <  0
    o_ref   : VMEM (TILE_R, TILE_HW)
    """
    x = x_ref[...]
    pos = pos_ref[...]                      # (TILE_R, 1) -> lane-broadcast
    neg = neg_ref[...]
    scale = jnp.where(x >= 0, pos, neg)     # 1 cmp + 1 select
    o_ref[...] = x * scale                  # 1 vmul


def _tile(dim, cap):
    # Full dim is always a legal block; otherwise use the (8/128-aligned) cap and
    # let Pallas mask the partial edge block.
    return dim if dim <= cap else cap


@jax.jit
def mixed_act_layer(x, sample_arc, prelu_slope):
    """x: (bs, C, H, W) f32, sample_arc: (bs,) int, prelu_slope: (C, 1) f32."""
    bs, C, H, W = x.shape
    rows, HW = bs * C, H * W
    x2 = x.reshape(rows, HW)

    # ---- hoisted branch selection (plain JAX on bs*C scalars) -------------------
    arc = sample_arc.astype(jnp.int32)                              # (bs,)
    slope_c = prelu_slope.reshape(C).astype(x.dtype)                # (C,)
    neg_table = jnp.stack(
        [
            jnp.zeros((C,), x.dtype),                # ReLU
            jnp.full((C,), LEAKY_SLOPE, x.dtype),    # LeakyReLU(0.2)
            slope_c,                                 # PReLU (per-channel)
            jnp.ones((C,), x.dtype),                 # Identity
        ],
        axis=0,
    )                                                               # (NUM_BRANCH, C)
    valid = ((arc >= 0) & (arc < NUM_BRANCH))[:, None]              # (bs, 1)
    arc_c = jnp.clip(arc, 0, NUM_BRANCH - 1)
    neg = jnp.where(valid, neg_table[arc_c], 0.0)                   # (bs, C)
    pos = jnp.where(valid, jnp.ones((bs, C), x.dtype), 0.0)         # (bs, C)
    neg = neg.reshape(rows, 1)
    pos = pos.reshape(rows, 1)

    # ---- 2D tiling ---------------------------------------------------------------
    tile_r = _tile(rows, TILE_R_MAX)
    tile_hw = _tile(HW, TILE_HW_MAX)
    grid = (pl.cdiv(rows, tile_r), pl.cdiv(HW, tile_hw))

    out = pl.pallas_call(
        mixed_act_kernel,
        out_shape=jax.ShapeDtypeStruct((rows, HW), x.dtype),
        grid_spec=pltpu.PrefetchScalarGridSpec(
            num_scalar_prefetch=0,
            grid=grid,
            in_specs=[
                pl.BlockSpec((tile_r, tile_hw), lambda i, j: (i, j)),  # x
                pl.BlockSpec((tile_r, 1),       lambda i, j: (i, 0)),  # pos scale
                pl.BlockSpec((tile_r, 1),       lambda i, j: (i, 0)),  # neg scale
            ],
            out_specs=pl.BlockSpec((tile_r, tile_hw), lambda i, j: (i, j)),
        ),
        compiler_params=pltpu.CompilerParams(
            dimension_semantics=("parallel", "parallel")),
    )(x2, pos, neg)

    return out.reshape(bs, C, H, W)


def mixed_act_reference(x, sample_arc, prelu_slope):
    """Pure-JAX reference mirroring the PyTorch forward (onehot * cat -> sum)."""
    bs = x.shape[0]
    slope = prelu_slope.reshape(1, -1, 1, 1)
    branch_outs = jnp.stack(
        [
            jnp.maximum(x, 0.0),
            jnp.where(x >= 0, x, LEAKY_SLOPE * x),
            jnp.where(x >= 0, x, slope * x),
            x,
        ],
        axis=1,
    )  # (bs, num_branch, C, H, W)
    onehot = jax.nn.one_hot(sample_arc, NUM_BRANCH, dtype=x.dtype)
    onehot = onehot.reshape(bs, NUM_BRANCH, 1, 1, 1)
    return (onehot * branch_outs).sum(axis=1)


if __name__ == "__main__":
    key = jax.random.PRNGKey(0)

    # --- small shape matching the module spec ------------------------------------
    bs, C, H, W = 2, 4, 16, 16
    kx, karc = jax.random.split(key)
    x = jax.random.normal(kx, (bs, C, H, W), dtype=jnp.float32)
    sample_arc = jax.random.randint(karc, (bs,), 0, NUM_BRANCH, dtype=jnp.int32)
    prelu_slope = jnp.full((C, 1), 0.25, dtype=jnp.float32)   # PyTorch PReLU default

    out = jax.block_until_ready(mixed_act_layer(x, sample_arc, prelu_slope))
    ref = mixed_act_reference(x, sample_arc, prelu_slope)
    assert out.shape == (bs, C, H, W)
    assert jnp.allclose(out, ref, atol=1e-6, rtol=1e-6)

    # --- slightly larger shape to exercise the 2D multi-block path ---------------
    bs2, C2, H2, W2 = 2, 16, 64, 64
    kx2, karc2 = jax.random.split(jax.random.PRNGKey(1))
    x2 = jax.random.normal(kx2, (bs2, C2, H2, W2), dtype=jnp.float32)
    arc2 = jax.random.randint(karc2, (bs2,), 0, NUM_BRANCH, dtype=jnp.int32)
    slope2 = jnp.full((C2, 1), 0.25, dtype=jnp.float32)

    out2 = jax.block_until_ready(mixed_act_layer(x2, arc2, slope2))
    ref2 = mixed_act_reference(x2, arc2, slope2)
    assert jnp.allclose(out2, ref2, atol=1e-6, rtol=1e-6)

    print("KERNEL_OK")
</pallas_src>

<mosaic_0001>
module attributes {stable_mosaic.version = 11 : i64} {
  func.func @mixed_act_kernel(%arg0: i32, %arg1: i32, %arg2: memref<8x256xf32, #tpu.memory_space<vmem>>, %arg3: memref<8x1xf32, #tpu.memory_space<vmem>>, %arg4: memref<8x1xf32, #tpu.memory_space<vmem>>, %arg5: memref<8x256xf32, #tpu.memory_space<vmem>>) attributes {dimension_semantics = [#tpu.dimension_semantics<parallel>, #tpu.dimension_semantics<parallel>], iteration_bounds = array<i64: 1, 1>, scalar_prefetch = 0 : i64, scratch_operands = 0 : i64, tpu.core_type = #tpu.core_type<tc>, window_params = [{transform_indices = @transform_0, window_bounds = array<i64: 8, 256>}, {transform_indices = @transform_1, window_bounds = array<i64: 8, 1>}, {transform_indices = @transform_2, window_bounds = array<i64: 8, 1>}, {transform_indices = @transform_3, window_bounds = array<i64: 8, 256>}]} {
    %c0 = arith.constant 0 : index
    %c0_0 = arith.constant 0 : index
    %0 = vector.load %arg2[%c0, %c0_0] : memref<8x256xf32, #tpu.memory_space<vmem>>, vector<8x256xf32>
    %c0_1 = arith.constant 0 : index
    %c0_2 = arith.constant 0 : index
    %1 = vector.load %arg3[%c0_1, %c0_2] : memref<8x1xf32, #tpu.memory_space<vmem>>, vector<8x1xf32>
    %c0_3 = arith.constant 0 : index
    %c0_4 = arith.constant 0 : index
    %2 = vector.load %arg4[%c0_3, %c0_4] : memref<8x1xf32, #tpu.memory_space<vmem>>, vector<8x1xf32>
    %cst = arith.constant 0.000000e+00 : f32
    %3 = vector.broadcast %cst : f32 to vector<8x256xf32>
    %4 = arith.cmpf oge, %0, %3 : vector<8x256xf32>
    %5 = vector.shape_cast %1 : vector<8x1xf32> to vector<8x1xf32>
    %6 = vector.broadcast %5 : vector<8x1xf32> to vector<8x256xf32>
    %7 = vector.shape_cast %2 : vector<8x1xf32> to vector<8x1xf32>
    %8 = vector.broadcast %7 : vector<8x1xf32> to vector<8x256xf32>
    %9 = arith.select %4, %6, %8 : vector<8x256xi1>, vector<8x256xf32>
    %10 = arith.mulf %0, %9 : vector<8x256xf32>
    %c0_5 = arith.constant 0 : index
    %c0_6 = arith.constant 0 : index
    %11 = vector.load %arg5[%c0_5, %c0_6] : memref<8x256xf32, #tpu.memory_space<vmem>>, vector<8x256xf32>
    tpu.vector_store %arg5[%c0_5, %c0_6], %10 {strides = array<i32>} : memref<8x256xf32, #tpu.memory_space<vmem>>, vector<8x256xf32>,
    return
  }
  func.func @transform_0(%arg0: i32, %arg1: i32) -> (i32, i32) {
    %c0_i32 = arith.constant 0 : i32
    return %arg0, %arg1 : i32, i32
  }
  func.func @transform_1(%arg0: i32, %arg1: i32) -> (i32, i32) {
    %c0_i32 = arith.constant 0 : i32
    %c0_i32_0 = arith.constant 0 : i32
    return %arg0, %c0_i32 : i32, i32
  }
  func.func @transform_2(%arg0: i32, %arg1: i32) -> (i32, i32) {
    %c0_i32 = arith.constant 0 : i32
    %c0_i32_0 = arith.constant 0 : i32
    return %arg0, %c0_i32 : i32, i32
  }
  func.func @transform_3(%arg0: i32, %arg1: i32) -> (i32, i32) {
    %c0_i32 = arith.constant 0 : i32
    return %arg0, %arg1 : i32, i32
  }
}

</mosaic_0001>

<llo_original>
// kernel: mixed_act_layer.1
$region0: #{mixed_act_layer.1}
  #allocation0 [shape = 'u32[]', space=smem, size = 0x4, offset = 0x4, fixed_abs, tag = 'smem constant byte address 0x4 - core index']
  #allocation1 [shape = 'u32[72,128]{1,0:T(1,128)}', space=vmem, size = 0x9000, scoped, tag = 'internal scratch']
  %s0 = inlined_call_operand.vmem [shape: f32[8,256], index: 0, kind: input, shape index: {}]
  %s1 = inlined_call_operand.vmem [shape: f32[8,1], index: 1, kind: input, shape index: {}]
  %s2 = inlined_call_operand.vmem [shape: f32[8,1], index: 2, kind: input, shape index: {}]
  %s3 = inlined_call_operand.vmem [shape: f32[8,256], index: 3, kind: output, shape index: {}]
  %s4 = sld [smem:[#allocation0]]
  $region22: #{mixed_act_layer.1} parent=0
    _
  %s6 = ssub.s32 1, %s4
  %s7 = scalar_select 0, %s6, %s4
  // Predicated region
  $region2: #{mixed_act_layer.1} parent=0 // pred_check
    _
  $region3: #{mixed_act_layer.1} parent=0 // pred_check_branch
    %9 = sbr.rel (0) target = $region5
  $region4: #{mixed_act_layer.1} parent=0 // pred_region
    _
  $region5: #{mixed_act_layer.1} parent=0 // pred_fallthru
    _
  // Predicated region
  $region6: #{mixed_act_layer.1} parent=0 // pred_check
    _
  $region7: #{mixed_act_layer.1} parent=0 // pred_check_branch
    %11 = sbr.rel (0) target = $region9
  $region8: #{mixed_act_layer.1} parent=0 // pred_region
    _
  $region9: #{mixed_act_layer.1} parent=0 // pred_fallthru
    _
  // Predicated region
  $region10: #{mixed_act_layer.1} parent=0 // pred_check
    _
  $region11: #{mixed_act_layer.1} parent=0 // pred_check_branch
    %13 = sbr.rel (0) target = $region13
  $region12: #{mixed_act_layer.1} parent=0 // pred_region
    _
  $region13: #{mixed_act_layer.1} parent=0 // pred_fallthru
    _
  %v14 = vld [vmem:[%s0] sm:$0xff]
  %v15 = vld [vmem:[%s0 + $0x8] sm:$0xff]
  %v16 = vld [vmem:[%s1] sm:$0xff]
  %v17 = vld [vmem:[%s2] sm:$0xff]
  %vm18 = vcmp.ge.f32.partialorder %v14, 0.0
  %vm19 = vcmp.ge.f32.partialorder %v15, 0.0
  %21 = vset.pattern.permute.xlu0 0
  %22 = vperm.xlu0 %21, %v16
  %v23 = vpop.permute.xlu0 %22
  %26 = vset.pattern.permute.xlu0 0
  %27 = vperm.xlu0 %26, %v17
  %v28 = vpop.permute.xlu0 %27
  %v30 = vsel %vm18, %v23, %v28
  %v31 = vsel %vm19, %v23, %v28
  %v32 = vmul.f32 %v14, %v30
  %v33 = vmul.f32 %v15, %v31
  %34 = vst [vmem:[%s3] sm:$0xff] %v32
  %35 = vst [vmem:[%s3 + $0x8] sm:$0xff] %v33
  // Predicated region
  $region14: #{mixed_act_layer.1} parent=0 // pred_check
    _
  $region15: #{mixed_act_layer.1} parent=0 // pred_check_branch
    %37 = sbr.rel (0) target = $region17
  $region16: #{mixed_act_layer.1} parent=0 // pred_region
    _
  $region17: #{mixed_act_layer.1} parent=0 // pred_fallthru
    _
  // Predicated region
  $region18: #{mixed_act_layer.1} parent=0 // pred_check
    _
  $region19: #{mixed_act_layer.1} parent=0 // pred_check_branch
    %39 = sbr.rel (0) target = $region21
  $region20: #{mixed_act_layer.1} parent=0 // pred_region
    _
  $region21: #{mixed_act_layer.1} parent=0 // pred_fallthru
    _

</llo_original>
